<compile_context>
chip_gen: v6e
topology: v6e:2x2x1
jax: 0.10.0
libtpu: 0.0.40
codegen_flags: <defaults>
</compile_context>

<pallas_src>
import functools

import jax
import jax.numpy as jnp
from jax.experimental import pallas as pl
from jax.experimental.pallas import tpu as pltpu

HIDDEN = 64
STATE_DIM = 2
ACTION_BOUND = 3.0

# Only core_parallel actually shards a grid axis across v7x's two
# TensorCores ("parallel" does not change codegen).  Harmless on 1-TC chips;
# getattr keeps older jax versions working.
_BATCH_DIM_SEMANTICS = getattr(pltpu, "CORE_PARALLEL", "parallel")


def _softplus(x):
    # torch.nn.functional.softplus (beta=1, threshold=20): x for x > 20,
    # else log1p(exp(x)).  exp() overflows to inf on the >20 branch but the
    # select discards it, so the forward value is exact.
    # (Forward-only: differentiating through this needs a custom VJP.)
    return jnp.where(x > 20.0, x, jnp.log1p(jnp.exp(x)))


def actor_kernel(x_ref, p_ref, o_ref):
    # x_ref : (2, BT)    state tile (features on sublanes, batch on lanes)
    # p_ref : (64, 5)    packed params: [w1[:,0], w1[:,1], b1, w2^T, b2(bcast)]
    # o_ref : (1, BT)
    x0 = x_ref[0:1, :]                       # (1, BT)
    x1 = x_ref[1:2, :]                       # (1, BT)

    w1a = p_ref[:, 0:1]                      # (64, 1)
    w1b = p_ref[:, 1:2]                      # (64, 1)
    b1 = p_ref[:, 2:3]                       # (64, 1)
    w2 = p_ref[:, 3:4]                       # (64, 1)
    b2 = p_ref[0:1, 4:5]                     # (1, 1)

    # fc1: K=2 contraction -> two broadcast VPU FMAs (no MXU).
    h = w1a * x0 + w1b * x1 + b1             # (64, BT)
    h = _softplus(h)

    # fc2: N=1 output -> elementwise multiply + sublane (XLU) reduction.
    a = jnp.sum(h * w2, axis=0, keepdims=True) + b2   # (1, BT)

    o_ref[...] = jnp.tanh(a) * ACTION_BOUND


def _pack_params(w1, b1, w2, b2):
    # w1: (64, 2), b1: (64,), w2: (1, 64), b2: (1,)  ->  (64, 5) f32
    return jnp.concatenate(
        [
            w1.astype(jnp.float32),
            b1.reshape(HIDDEN, 1).astype(jnp.float32),
            w2.reshape(HIDDEN, 1).astype(jnp.float32),
            jnp.broadcast_to(b2.reshape(1, 1).astype(jnp.float32), (HIDDEN, 1)),
        ],
        axis=1,
    )


def _actor_pallas(state_t, params, *, b_tile):
    """state_t: (2, B) f32, params: (64, 5) f32 -> (1, B) f32."""
    B = state_t.shape[1]

    # Batch tile: multiple of 128 lanes, capped at b_tile.  Large tiles
    # amortize the ~600-cycle per-grid-step overhead; the (64, bt) f32
    # intermediates stay small (1 MiB at bt=4096) relative to VMEM.
    bt = min(b_tile, pl.cdiv(B, 128) * 128)
    grid = pl.cdiv(B, bt)   # ragged last block; padded lanes may hold inf/NaN
                            # from softplus of stale data -- their stores are
                            # masked off by Pallas, never reaching HBM.

    cost = pl.CostEstimate(
        flops=5 * HIDDEN * B,
        transcendentals=(2 * HIDDEN + 1) * B,     # exp + log1p per hidden, tanh
        bytes_accessed=12 * B + params.size * 4,
    )

    return pl.pallas_call(
        actor_kernel,
        out_shape=jax.ShapeDtypeStruct((1, B), jnp.float32),
        grid_spec=pltpu.PrefetchScalarGridSpec(
            num_scalar_prefetch=0,
            grid=(grid,),
            in_specs=[
                pl.BlockSpec((STATE_DIM, bt), lambda i: (0, i)),   # state tile
                pl.BlockSpec((HIDDEN, 5), lambda i: (0, 0)),       # packed params
            ],
            out_specs=pl.BlockSpec((1, bt), lambda i: (0, i)),
        ),
        compiler_params=pltpu.CompilerParams(
            dimension_semantics=(_BATCH_DIM_SEMANTICS,),
            vmem_limit_bytes=32 * 1024 * 1024,     # v5e headroom for big tiles
        ),
        cost_estimate=cost,
    )(state_t.astype(jnp.float32), params)


@functools.partial(jax.jit, static_argnames=("b_tile",))
def actor_forward_t(state_t, w1, b1, w2, b2, *, b_tile=4096):
    """Lane-dense entry point: state_t (2, B) -> action (1, B)."""
    return _actor_pallas(state_t, _pack_params(w1, b1, w2, b2), b_tile=b_tile)


@functools.partial(jax.jit, static_argnames=("b_tile",))
def actor_forward(state, w1, b1, w2, b2, *, b_tile=4096):
    """Module-compatible entry point: state (B, 2) -> action (B, 1)."""
    out_t = _actor_pallas(state.T, _pack_params(w1, b1, w2, b2), b_tile=b_tile)
    return out_t.reshape(-1, 1)   # (1,B)->(B,1) is a free reshape


def init_actor_params(key):
    # PyTorch default Linear init: U(-1/sqrt(fan_in), 1/sqrt(fan_in)),
    # parameter shapes: weight (out, in), bias (out,).
    k1, k2, k3, k4 = jax.random.split(key, 4)
    bound1 = 1.0 / jnp.sqrt(2.0)
    bound2 = 1.0 / jnp.sqrt(64.0)
    w1 = jax.random.uniform(k1, (HIDDEN, STATE_DIM), jnp.float32, -bound1, bound1)
    b1 = jax.random.uniform(k2, (HIDDEN,), jnp.float32, -bound1, bound1)
    w2 = jax.random.uniform(k3, (1, HIDDEN), jnp.float32, -bound2, bound2)
    b2 = jax.random.uniform(k4, (1,), jnp.float32, -bound2, bound2)
    return w1, b1, w2, b2


def actor_reference(state, w1, b1, w2, b2):
    h = jax.nn.softplus(state @ w1.T + b1)                 # (B, 64)
    return jnp.tanh(h @ w2.T + b2) * ACTION_BOUND          # (B, 1)


if __name__ == "__main__":
    key = jax.random.PRNGKey(0)
    pkey, xkey = jax.random.split(key)

    w1, b1, w2, b2 = init_actor_params(pkey)

    # Small batch: single ragged tile (B=8 < 128 lanes).
    batch = 8
    state = jax.random.normal(xkey, (batch, STATE_DIM), jnp.float32)
    out = jax.block_until_ready(actor_forward(state, w1, b1, w2, b2))
    ref = actor_reference(state, w1, b1, w2, b2)
    assert out.shape == (batch, 1)
    assert jnp.allclose(out, ref, atol=1e-5, rtol=1e-5)

    # Larger, non-multiple-of-128 batch: exercises the ragged last block
    # (no wrapper zero-pad / slice).
    big = 1500
    state_big = jax.random.normal(xkey, (big, STATE_DIM), jnp.float32)
    out_big = jax.block_until_ready(actor_forward(state_big, w1, b1, w2, b2))
    ref_big = actor_reference(state_big, w1, b1, w2, b2)
    assert out_big.shape == (big, 1)
    assert jnp.allclose(out_big, ref_big, atol=1e-5, rtol=1e-5)

    # Force a multi-step grid (b_tile=512 -> 3 tiles, last one ragged) and the
    # lane-dense (2, B) -> (1, B) entry point.
    out_multi = jax.block_until_ready(
        actor_forward(state_big, w1, b1, w2, b2, b_tile=512))
    assert jnp.allclose(out_multi, ref_big, atol=1e-5, rtol=1e-5)

    out_t = jax.block_until_ready(
        actor_forward_t(state_big.T, w1, b1, w2, b2))
    assert out_t.shape == (1, big)
    assert jnp.allclose(out_t.reshape(-1, 1), ref_big, atol=1e-5, rtol=1e-5)

    print("KERNEL_OK")
</pallas_src>

<mosaic_0001>
module attributes {stable_mosaic.version = 11 : i64} {
  func.func @actor_kernel(%arg0: i32, %arg1: memref<2x128xf32, #tpu.memory_space<vmem>>, %arg2: memref<64x5xf32, #tpu.memory_space<vmem>>, %arg3: memref<1x128xf32, #tpu.memory_space<vmem>>) attributes {dimension_semantics = [#tpu.dimension_semantics<core_parallel>], iteration_bounds = array<i64: 1>, scalar_prefetch = 0 : i64, scratch_operands = 0 : i64, tpu.core_type = #tpu.core_type<tc>, window_params = [{transform_indices = @transform_0, window_bounds = array<i64: 2, 128>}, {pipeline_mode = #tpu.pipeline_mode<synchronous>, transform_indices = @transform_1, window_bounds = array<i64: 64, 5>}, {transform_indices = @transform_2, window_bounds = array<i64: 1, 128>}]} {
    %c0 = arith.constant 0 : index
    %c0_0 = arith.constant 0 : index
    %0 = vector.load %arg1[%c0, %c0_0] : memref<2x128xf32, #tpu.memory_space<vmem>>, vector<1x128xf32>
    %c1 = arith.constant 1 : index
    %c0_1 = arith.constant 0 : index
    %1 = vector.load %arg1[%c1, %c0_1] : memref<2x128xf32, #tpu.memory_space<vmem>>, vector<1x128xf32>
    %c0_2 = arith.constant 0 : index
    %c0_3 = arith.constant 0 : index
    %2 = vector.load %arg2[%c0_2, %c0_3] : memref<64x5xf32, #tpu.memory_space<vmem>>, vector<64x1xf32>
    %c0_4 = arith.constant 0 : index
    %c1_5 = arith.constant 1 : index
    %3 = vector.load %arg2[%c0_4, %c1_5] : memref<64x5xf32, #tpu.memory_space<vmem>>, vector<64x1xf32>
    %c0_6 = arith.constant 0 : index
    %c2 = arith.constant 2 : index
    %4 = vector.load %arg2[%c0_6, %c2] : memref<64x5xf32, #tpu.memory_space<vmem>>, vector<64x1xf32>
    %c0_7 = arith.constant 0 : index
    %c3 = arith.constant 3 : index
    %5 = vector.load %arg2[%c0_7, %c3] : memref<64x5xf32, #tpu.memory_space<vmem>>, vector<64x1xf32>
    %c0_8 = arith.constant 0 : index
    %c4 = arith.constant 4 : index
    %6 = vector.load %arg2[%c0_8, %c4] : memref<64x5xf32, #tpu.memory_space<vmem>>, vector<1x1xf32>
    %7 = vector.broadcast %2 : vector<64x1xf32> to vector<64x128xf32>
    %8 = vector.broadcast %0 : vector<1x128xf32> to vector<64x128xf32>
    %9 = arith.mulf %7, %8 : vector<64x128xf32>
    %10 = vector.broadcast %3 : vector<64x1xf32> to vector<64x128xf32>
    %11 = vector.broadcast %1 : vector<1x128xf32> to vector<64x128xf32>
    %12 = arith.mulf %10, %11 : vector<64x128xf32>
    %13 = arith.addf %9, %12 : vector<64x128xf32>
    %14 = vector.broadcast %4 : vector<64x1xf32> to vector<64x128xf32>
    %15 = arith.addf %13, %14 : vector<64x128xf32>
    %cst = arith.constant 2.000000e+01 : f32
    %16 = vector.broadcast %cst : f32 to vector<64x128xf32>
    %17 = arith.cmpf ogt, %15, %16 : vector<64x128xf32>
    %18 = math.exp %15 : vector<64x128xf32>
    %19 = math.log1p %18 : vector<64x128xf32>
    %20 = arith.select %17, %15, %19 : vector<64x128xi1>, vector<64x128xf32>
    %21 = vector.broadcast %5 : vector<64x1xf32> to vector<64x128xf32>
    %22 = arith.mulf %20, %21 : vector<64x128xf32>
    %cst_9 = arith.constant dense<0.000000e+00> : vector<128xf32>
    %23 = vector.multi_reduction <add>, %22, %cst_9 [0] : vector<64x128xf32> to vector<128xf32>
    %24 = vector.shape_cast %23 : vector<128xf32> to vector<1x128xf32>
    %25 = vector.broadcast %6 : vector<1x1xf32> to vector<1x128xf32>
    %26 = arith.addf %24, %25 : vector<1x128xf32>
    %27 = math.tanh %26 : vector<1x128xf32>
    %cst_10 = arith.constant 3.000000e+00 : f32
    %28 = vector.broadcast %cst_10 : f32 to vector<1x128xf32>
    %29 = arith.mulf %27, %28 : vector<1x128xf32>
    %c0_11 = arith.constant 0 : index
    %c0_12 = arith.constant 0 : index
    %30 = vector.load %arg3[%c0_11, %c0_12] : memref<1x128xf32, #tpu.memory_space<vmem>>, vector<1x128xf32>
    tpu.vector_store %arg3[%c0_11, %c0_12], %29 {strides = array<i32>} : memref<1x128xf32, #tpu.memory_space<vmem>>, vector<1x128xf32>,
    return
  }
  func.func @transform_0(%arg0: i32) -> (i32, i32) {
    %c0_i32 = arith.constant 0 : i32
    %c0_i32_0 = arith.constant 0 : i32
    return %c0_i32, %arg0 : i32, i32
  }
  func.func @transform_1(%arg0: i32) -> (i32, i32) {
    %c0_i32 = arith.constant 0 : i32
    %c0_i32_0 = arith.constant 0 : i32
    %c0_i32_1 = arith.constant 0 : i32
    return %c0_i32, %c0_i32_0 : i32, i32
  }
  func.func @transform_2(%arg0: i32) -> (i32, i32) {
    %c0_i32 = arith.constant 0 : i32
    %c0_i32_0 = arith.constant 0 : i32
    return %c0_i32, %arg0 : i32, i32
  }
}

</mosaic_0001>

<llo_original>
// kernel: actor_forward.1
$region0: #{actor_forward.1}
  #allocation0 [shape = 'u32[]', space=smem, size = 0x4, offset = 0x4, fixed_abs, tag = 'smem constant byte address 0x4 - core index']
  #allocation1 [shape = 'u32[144,128]{1,0:T(1,128)}', space=vmem, size = 0x12000, scoped, tag = 'internal scratch']
  %s0 = inlined_call_operand.vmem [shape: f32[2,8], index: 0, kind: input, shape index: {}]
  %s1 = inlined_call_operand.vmem [shape: f32[64,5], index: 1, kind: input, shape index: {}]
  %s2 = inlined_call_operand.hbm [shape: f32[1,8], index: 2, kind: output, shape index: {}]
  %s3 = sld [smem:[#allocation0]]
  $region18: #{actor_forward.1} parent=0
    _
  %s5 = ssub.s32 1, %s3
  %s6 = scalar_select 0, %s5, %s3
  $region1: #{actor_forward.1} parent=0
    #allocation2 [shape = 'u8[512]{0}', space=vmem, size = 0x400, scoped, tag = 'output window, operand 0, single buffered']
    #allocation3 [shape = 's32[1]{0}', space=sflag, size = 0x4, scoped, tag = 'scoped memory for actor_forward.1']
    %7 = vsyncpa [#allocation3], 0
    // Predicated region
    $region2: #{actor_forward.1} parent=1 // pred_check
      _
    $region3: #{actor_forward.1} parent=1 // pred_check_branch
      %9 = sbr.rel (0) target = $region5
    $region4: #{actor_forward.1} parent=1 // pred_region
      %p10 = scmp.lt.s32.totalorder %s6, 0
      %s11 = scalar_select %p10, %s6, 0
      %s12 = smul.addr %s11, 2
      %s13 = scalar_lea.vmem %s0, %s12
    $region5: #{actor_forward.1} parent=1 // pred_fallthru
      _
    // Predicated region
    $region6: #{actor_forward.1} parent=1 // pred_check
      _
    $region7: #{actor_forward.1} parent=1 // pred_check_branch
      %15 = sbr.rel (0) target = $region9
    $region8: #{actor_forward.1} parent=1 // pred_region
      _
    $region9: #{actor_forward.1} parent=1 // pred_fallthru
      _
    %p16 = scmp.lt.s32.totalorder %s6, 0
    %s17 = scalar_select %p16, %s6, 0
    %s18 = smul.addr %s17, 2
    %s19 = scalar_lea.vmem %s0, %s18
    %p20 = scmp.lt.s32.totalorder %s6, 0
    %s21 = scalar_select %p20, %s6, 0
    %s22 = smul.addr %s21, 2
    %s23 = scalar_lea.vmem %s0, %s22
    %v24 = vld [vmem:[%s23] sm:$0x1]
    %v25 = vld [vmem:[%s23 + $0x1] sm:$0x1]
    %v26 = vld [vmem:[%s1] sm:$0xff]
    %v27 = vld [vmem:[%s1 + $0x8] sm:$0xff]
    %v28 = vld [vmem:[%s1 + $0x10] sm:$0xff]
    %v29 = vld [vmem:[%s1 + $0x18] sm:$0xff]
    %v30 = vld [vmem:[%s1 + $0x20] sm:$0xff]
    %v31 = vld [vmem:[%s1 + $0x28] sm:$0xff]
    %v32 = vld [vmem:[%s1 + $0x30] sm:$0xff]
    %v33 = vld [vmem:[%s1 + $0x38] sm:$0xff]
    %v34 = vld [vmem:[%s1] sm:$0x1]
    %36 = vset.pattern.permute.xlu0 0
    %37 = vperm.xlu0 %36, %v26
    %v38 = vpop.permute.xlu0 %37
    %41 = vset.pattern.permute.xlu0 0
    %42 = vperm.xlu0 %41, %v27
    %v43 = vpop.permute.xlu0 %42
    %46 = vset.pattern.permute.xlu0 0
    %47 = vperm.xlu0 %46, %v28
    %v48 = vpop.permute.xlu0 %47
    %51 = vset.pattern.permute.xlu0 0
    %52 = vperm.xlu0 %51, %v29
    %v53 = vpop.permute.xlu0 %52
    %56 = vset.pattern.permute.xlu0 0
    %57 = vperm.xlu0 %56, %v30
    %v58 = vpop.permute.xlu0 %57
    %61 = vset.pattern.permute.xlu0 0
    %62 = vperm.xlu0 %61, %v31
    %v63 = vpop.permute.xlu0 %62
    %66 = vset.pattern.permute.xlu0 0
    %67 = vperm.xlu0 %66, %v32
    %v68 = vpop.permute.xlu0 %67
    %71 = vset.pattern.permute.xlu0 0
    %72 = vperm.xlu0 %71, %v33
    %v73 = vpop.permute.xlu0 %72
    %v75 = vlaneseq
    %v76 = vshrl.u32 %v75, 7
    %v77 = vsub.s32 0, %v76
    %v78 = vrot.slane %v24, %v77
    %v79 = vmul.f32 %v38, %v78
    %v80 = vmul.f32 %v43, %v78
    %v81 = vmul.f32 %v48, %v78
    %v82 = vmul.f32 %v53, %v78
    %v83 = vmul.f32 %v58, %v78
    %v84 = vmul.f32 %v63, %v78
    %v85 = vmul.f32 %v68, %v78
    %v86 = vmul.f32 %v73, %v78
    %87 = vset.pattern.permute.xlu0 1
    %88 = vperm.xlu0 %87, %v26
    %v89 = vpop.permute.xlu0 %88
    %91 = vset.pattern.permute.xlu0 1
    %92 = vperm.xlu0 %91, %v27
    %v93 = vpop.permute.xlu0 %92
    %95 = vset.pattern.permute.xlu0 1
    %96 = vperm.xlu0 %95, %v28
    %v97 = vpop.permute.xlu0 %96
    %99 = vset.pattern.permute.xlu0 1
    %100 = vperm.xlu0 %99, %v29
    %v101 = vpop.permute.xlu0 %100
    %103 = vset.pattern.permute.xlu0 1
    %104 = vperm.xlu0 %103, %v30
    %v105 = vpop.permute.xlu0 %104
    %107 = vset.pattern.permute.xlu0 1
    %108 = vperm.xlu0 %107, %v31
    %v109 = vpop.permute.xlu0 %108
    %111 = vset.pattern.permute.xlu0 1
    %112 = vperm.xlu0 %111, %v32
    %v113 = vpop.permute.xlu0 %112
    %115 = vset.pattern.permute.xlu0 1
    %116 = vperm.xlu0 %115, %v33
    %v117 = vpop.permute.xlu0 %116
    %v119 = vlaneseq
    %v120 = vshrl.u32 %v119, 7
    %v121 = vsub.s32 0, %v120
    %v122 = vrot.slane %v25, %v121
    %v123 = vmul.f32 %v89, %v122
    %v124 = vmul.f32 %v93, %v122
    %v125 = vmul.f32 %v97, %v122
    %v126 = vmul.f32 %v101, %v122
    %v127 = vmul.f32 %v105, %v122
    %v128 = vmul.f32 %v109, %v122
    %v129 = vmul.f32 %v113, %v122
    %v130 = vmul.f32 %v117, %v122
    %v131 = vadd.f32 %v79, %v123
    %v132 = vadd.f32 %v80, %v124
    %v133 = vadd.f32 %v81, %v125
    %v134 = vadd.f32 %v82, %v126
    %v135 = vadd.f32 %v83, %v127
    %v136 = vadd.f32 %v84, %v128
    %v137 = vadd.f32 %v85, %v129
    %v138 = vadd.f32 %v86, %v130
    %139 = vset.pattern.permute.xlu0 2
    %140 = vperm.xlu0 %139, %v26
    %v141 = vpop.permute.xlu0 %140
    %143 = vset.pattern.permute.xlu0 2
    %144 = vperm.xlu0 %143, %v27
    %v145 = vpop.permute.xlu0 %144
    %147 = vset.pattern.permute.xlu0 2
    %148 = vperm.xlu0 %147, %v28
    %v149 = vpop.permute.xlu0 %148
    %151 = vset.pattern.permute.xlu0 2
    %152 = vperm.xlu0 %151, %v29
    %v153 = vpop.permute.xlu0 %152
    %155 = vset.pattern.permute.xlu0 2
    %156 = vperm.xlu0 %155, %v30
    %v157 = vpop.permute.xlu0 %156
    %159 = vset.pattern.permute.xlu0 2
    %160 = vperm.xlu0 %159, %v31
    %v161 = vpop.permute.xlu0 %160
    %163 = vset.pattern.permute.xlu0 2
    %164 = vperm.xlu0 %163, %v32
    %v165 = vpop.permute.xlu0 %164
    %167 = vset.pattern.permute.xlu0 2
    %168 = vperm.xlu0 %167, %v33
    %v169 = vpop.permute.xlu0 %168
    %v171 = vadd.f32 %v131, %v141
    %v172 = vadd.f32 %v132, %v145
    %v173 = vadd.f32 %v133, %v149
    %v174 = vadd.f32 %v134, %v153
    %v175 = vadd.f32 %v135, %v157
    %v176 = vadd.f32 %v136, %v161
    %v177 = vadd.f32 %v137, %v165
    %v178 = vadd.f32 %v138, %v169
    %vm179 = vcmp.gt.f32.partialorder %v171, 20.0
    %vm180 = vcmp.gt.f32.partialorder %v172, 20.0
    %vm181 = vcmp.gt.f32.partialorder %v173, 20.0
    %vm182 = vcmp.gt.f32.partialorder %v174, 20.0
    %vm183 = vcmp.gt.f32.partialorder %v175, 20.0
    %vm184 = vcmp.gt.f32.partialorder %v176, 20.0
    %vm185 = vcmp.gt.f32.partialorder %v177, 20.0
    %vm186 = vcmp.gt.f32.partialorder %v178, 20.0
    %v187 = vmul.f32 %v171, 1.442695
    %v188 = vpow.pop %v187
    %v189 = vmul.f32 %v172, 1.442695
    %v190 = vpow.pop %v189
    %v191 = vmul.f32 %v173, 1.442695
    %v192 = vpow.pop %v191
    %v193 = vmul.f32 %v174, 1.442695
    %v194 = vpow.pop %v193
    %v195 = vmul.f32 %v175, 1.442695
    %v196 = vpow.pop %v195
    %v197 = vmul.f32 %v176, 1.442695
    %v198 = vpow.pop %v197
    %v199 = vmul.f32 %v177, 1.442695
    %v200 = vpow.pop %v199
    %v201 = vmul.f32 %v178, 1.442695
    %v202 = vpow.pop %v201
    %v203 = vadd.f32 %v188, 1.0
    %v204 = vlog2.pop %v203
    %v205 = vmul.f32 %v204, 0.6931472
    %v206 = vmul.f32 -0.5, %v188
    %v207 = vadd.f32 %v206, 1.0
    %v208 = vmul.f32 %v207, %v188
    %v209 = vand.u32 2147483647, %v188
    %vm210 = vcmp.lt.f32.partialorder %v209, 0.0004427343
    %v211 = vsel %vm210, %v208, %v205
    %v212 = vadd.f32 %v190, 1.0
    %v213 = vlog2.pop %v212
    %v214 = vmul.f32 %v213, 0.6931472
    %v215 = vmul.f32 -0.5, %v190
    %v216 = vadd.f32 %v215, 1.0
    %v217 = vmul.f32 %v216, %v190
    %v218 = vand.u32 2147483647, %v190
    %vm219 = vcmp.lt.f32.partialorder %v218, 0.0004427343
    %v220 = vsel %vm219, %v217, %v214
    %v221 = vadd.f32 %v192, 1.0
    %v222 = vlog2.pop %v221
    %v223 = vmul.f32 %v222, 0.6931472
    %v224 = vmul.f32 -0.5, %v192
    %v225 = vadd.f32 %v224, 1.0
    %v226 = vmul.f32 %v225, %v192
    %v227 = vand.u32 2147483647, %v192
    %vm228 = vcmp.lt.f32.partialorder %v227, 0.0004427343
    %v229 = vsel %vm228, %v226, %v223
    %v230 = vadd.f32 %v194, 1.0
    %v231 = vlog2.pop %v230
    %v232 = vmul.f32 %v231, 0.6931472
    %v233 = vmul.f32 -0.5, %v194
    %v234 = vadd.f32 %v233, 1.0
    %v235 = vmul.f32 %v234, %v194
    %v236 = vand.u32 2147483647, %v194
    %vm237 = vcmp.lt.f32.partialorder %v236, 0.0004427343
    %v238 = vsel %vm237, %v235, %v232
    %v239 = vadd.f32 %v196, 1.0
    %v240 = vlog2.pop %v239
    %v241 = vmul.f32 %v240, 0.6931472
    %v242 = vmul.f32 -0.5, %v196
    %v243 = vadd.f32 %v242, 1.0
    %v244 = vmul.f32 %v243, %v196
    %v245 = vand.u32 2147483647, %v196
    %vm246 = vcmp.lt.f32.partialorder %v245, 0.0004427343
    %v247 = vsel %vm246, %v244, %v241
    %v248 = vadd.f32 %v198, 1.0
    %v249 = vlog2.pop %v248
    %v250 = vmul.f32 %v249, 0.6931472
    %v251 = vmul.f32 -0.5, %v198
    %v252 = vadd.f32 %v251, 1.0
    %v253 = vmul.f32 %v252, %v198
    %v254 = vand.u32 2147483647, %v198
    %vm255 = vcmp.lt.f32.partialorder %v254, 0.0004427343
    %v256 = vsel %vm255, %v253, %v250
    %v257 = vadd.f32 %v200, 1.0
    %v258 = vlog2.pop %v257
    %v259 = vmul.f32 %v258, 0.6931472
    %v260 = vmul.f32 -0.5, %v200
    %v261 = vadd.f32 %v260, 1.0
    %v262 = vmul.f32 %v261, %v200
    %v263 = vand.u32 2147483647, %v200
    %vm264 = vcmp.lt.f32.partialorder %v263, 0.0004427343
    %v265 = vsel %vm264, %v262, %v259
    %v266 = vadd.f32 %v202, 1.0
    %v267 = vlog2.pop %v266
    %v268 = vmul.f32 %v267, 0.6931472
    %v269 = vmul.f32 -0.5, %v202
    %v270 = vadd.f32 %v269, 1.0
    %v271 = vmul.f32 %v270, %v202
    %v272 = vand.u32 2147483647, %v202
    %vm273 = vcmp.lt.f32.partialorder %v272, 0.0004427343
    %v274 = vsel %vm273, %v271, %v268
    %v275 = vsel %vm179, %v171, %v211
    %v276 = vsel %vm180, %v172, %v220
    %v277 = vsel %vm181, %v173, %v229
    %v278 = vsel %vm182, %v174, %v238
    %v279 = vsel %vm183, %v175, %v247
    %v280 = vsel %vm184, %v176, %v256
    %v281 = vsel %vm185, %v177, %v265
    %v282 = vsel %vm186, %v178, %v274
    %283 = vset.pattern.permute.xlu0 3
    %284 = vperm.xlu0 %283, %v26
    %v285 = vpop.permute.xlu0 %284
    %287 = vset.pattern.permute.xlu0 3
    %288 = vperm.xlu0 %287, %v27
    %v289 = vpop.permute.xlu0 %288
    %291 = vset.pattern.permute.xlu0 3
    %292 = vperm.xlu0 %291, %v28
    %v293 = vpop.permute.xlu0 %292
    %295 = vset.pattern.permute.xlu0 3
    %296 = vperm.xlu0 %295, %v29
    %v297 = vpop.permute.xlu0 %296
    %299 = vset.pattern.permute.xlu0 3
    %300 = vperm.xlu0 %299, %v30
    %v301 = vpop.permute.xlu0 %300
    %303 = vset.pattern.permute.xlu0 3
    %304 = vperm.xlu0 %303, %v31
    %v305 = vpop.permute.xlu0 %304
    %307 = vset.pattern.permute.xlu0 3
    %308 = vperm.xlu0 %307, %v32
    %v309 = vpop.permute.xlu0 %308
    %311 = vset.pattern.permute.xlu0 3
    %312 = vperm.xlu0 %311, %v33
    %v313 = vpop.permute.xlu0 %312
    %v315 = vmul.f32 %v275, %v285
    %v316 = vmul.f32 %v276, %v289
    %v317 = vmul.f32 %v277, %v293
    %v318 = vmul.f32 %v278, %v297
    %v319 = vmul.f32 %v279, %v301
    %v320 = vmul.f32 %v280, %v305
    %v321 = vmul.f32 %v281, %v309
    %v322 = vmul.f32 %v282, %v313
    %v323 = vadd.f32 %v315, %v316
    %v324 = vadd.f32 %v323, %v317
    %v325 = vadd.f32 %v324, %v318
    %v326 = vadd.f32 %v325, %v319
    %v327 = vadd.f32 %v326, %v320
    %v328 = vadd.f32 %v327, %v321
    %v329 = vadd.f32 %v328, %v322
    %v330 = vrot.slane %v329, 4
    %v331 = vadd.f32 %v329, %v330
    %v332 = vrot.slane %v331, 2
    %v333 = vadd.f32 %v331, %v332
    %v334 = vrot.slane %v333, 1
    %v335 = vadd.f32 %v333, %v334
    %337 = vset.pattern.permute.xlu0 4
    %338 = vperm.xlu0 %337, %v34
    %v339 = vpop.permute.xlu0 %338
    %v341 = vadd.f32 %v335, %v339
    %v342 = vtanh.pop %v341
    %v343 = vmul.f32 %v342, 3.0
    %344 = vst [vmem:[#allocation2] sm:$0x1] %v343
    // Predicated region
    $region10: #{actor_forward.1} parent=1 // pred_check
      _
    $region11: #{actor_forward.1} parent=1 // pred_check_branch
      %346 = sbr.rel (0) target = $region13
    $region12: #{actor_forward.1} parent=1 // pred_region
      %s348 = ssub.s32 16, 16
      %349 = vsyncadd [#allocation3], %s348
      %s350 = smul.addr %s6, 16
      %s351 = scalar_lea.hbm %s2, %s350
      %s353 = sshll.u32 [#allocation2], 4
      %s354 = int_to_ptr.vmem [resolvable:$true] %s353
      %356 = dma.vmem_to_hbm [thread:$0]  %s354, 16, %s351, [#allocation3]
    $region13: #{actor_forward.1} parent=1 // pred_fallthru
      _
    // Predicated region
    $region14: #{actor_forward.1} parent=1 // pred_check
      _
    $region15: #{actor_forward.1} parent=1 // pred_check_branch
      %358 = sbr.rel (0) target = $region17
    $region16: #{actor_forward.1} parent=1 // pred_region
      %359 = dma.done [#allocation3], 16
    $region17: #{actor_forward.1} parent=1 // pred_fallthru
      _
    %360 = vsyncpa [#allocation3], 1

</llo_original>
